<compile_context>
chip_gen: v6e
topology: v6e:2x2x1
jax: 0.10.0
libtpu: 0.0.40
codegen_flags: <defaults>
</compile_context>

<pallas_src>
import functools

import jax
import jax.numpy as jnp
from jax import lax
from jax.experimental import pallas as pl
from jax.experimental.pallas import tpu as pltpu


def _smcc_kernel(y_pred_ref, y_true_ref, out_ref, g_acc, m_acc, s_acc, *,
                 mask_zero, epsilon, num_classes, block_c, num_pos):
    # y_pred_ref: (TB, TC) input dtype   y_true_ref: (TB, P) i32
    # out_ref:    (TB, 8)  f32
    # g_acc: (TB, P) f32 gathered logits   m_acc/s_acc: (TB, 1) f32 streaming LSE
    j = pl.program_id(1)
    nc = pl.num_programs(1)

    @pl.when(j == 0)
    def _init():
        g_acc[...] = jnp.zeros_like(g_acc)
        # appended zero column baked in: logsumexp([0]) == (m=0, s=1)
        m_acc[...] = jnp.zeros_like(m_acc)
        s_acc[...] = jnp.ones_like(s_acc)

    yp = y_pred_ref[...]                                  # (TB, TC) native dtype
    idx = y_true_ref[...]                                 # (TB, P) i32
    TB, TC = yp.shape
    P = num_pos
    neg_big = jnp.float32(-1e30)
    ragged = (num_classes % block_c) != 0                 # static

    c_off = j * block_c                                   # first class id in tile
    valid_lanes = num_classes - c_off                     # traced scalar
    cls_iota = lax.broadcasted_iota(jnp.int32, (TB, TC), 1)   # hoisted, reused

    # --- streaming logsumexp over classes (all_loss), f32 ----------------------
    yp_f32 = yp.astype(jnp.float32)
    ok = None
    if ragged:
        ok = cls_iota < valid_lanes                       # drop padding lanes
    if mask_zero:
        zok = cls_iota != (0 - c_off)                     # class 0 lives in tile 0 only
        ok = zok if ok is None else (ok & zok)
    y_all = yp_f32 if ok is None else jnp.where(ok, yp_f32, neg_big)

    t_max = jnp.max(y_all, axis=-1, keepdims=True)        # (TB, 1)
    m_old = m_acc[...]
    m_new = jnp.maximum(m_old, t_max)                     # m_old >= 0 always
    s_acc[...] = (s_acc[...] * jnp.exp(m_old - m_new)
                  + jnp.sum(jnp.exp(y_all - m_new), axis=-1, keepdims=True))
    m_acc[...] = m_new

    # --- gather y_pred_ext[idx] for this C tile ---------------------------------
    # Each index hits exactly one tile; other tiles contribute 0. idx == C
    # (appended zero column) never matches a valid lane -> contributes 0.
    # Selects/sums stay in the input dtype (exact: one nonzero element + zeros).
    cols = []
    for p in range(P):                                     # P small & static
        tgt = idx[:, p:p + 1] - c_off                      # (TB, 1) i32
        hit = cls_iota == tgt                              # (TB, TC) bool
        col = jnp.sum(jnp.where(hit, yp, 0), axis=-1, keepdims=True)
        if ragged:
            # only the last tile has padding lanes; a spurious match there means
            # tgt >= valid_lanes (i.e. idx >= num_classes) -> gathered value is 0.
            col = jnp.where(tgt < valid_lanes, col, 0)
        cols.append(col.astype(jnp.float32))
    g_acc[...] += jnp.concatenate(cols, axis=-1)

    # --- finalize on the last C tile --------------------------------------------
    @pl.when(j == nc - 1)
    def _finalize():
        all_loss = m_acc[...] + jnp.log(s_acc[...])        # (TB, 1)
        g = g_acc[...]                                     # (TB, P)
        if mask_zero:
            valid = idx != 0                               # pad positions masked out
            t = jnp.where(valid, -g, neg_big)
            gm = jnp.where(valid, g, neg_big)
        else:
            t = -g
            gm = g

        # pos_loss = logsumexp([-gathered (valid), 0])
        m_pos = jnp.maximum(jnp.max(t, axis=-1, keepdims=True), 0.0)
        s_pos = (jnp.sum(jnp.exp(t - m_pos), axis=-1, keepdims=True)
                 + jnp.exp(-m_pos))
        pos_loss = m_pos + jnp.log(s_pos)

        # neg_loss = all_loss + log(clip(1 - exp(lse(gathered) - all_loss), eps, 1))
        m_neg = jnp.max(gm, axis=-1, keepdims=True)        # finite (>= -1e30)
        s_neg = jnp.sum(jnp.exp(gm - m_neg), axis=-1, keepdims=True)
        aux = jnp.clip(1.0 - s_neg * jnp.exp(m_neg - all_loss),
                       jnp.float32(epsilon), 1.0)
        neg_loss = all_loss + jnp.log(aux)

        loss = pos_loss + neg_loss                         # (TB, 1) f32
        out_ref[...] = jnp.broadcast_to(loss, out_ref.shape).astype(out_ref.dtype)


def _default_vmem_limit_bytes():
    # ~75% of physical VMEM per TensorCore (v5e/v6e: 96 MiB, v7x: 48 MiB);
    # safe fallback 48 MiB works on every generation.
    try:
        cap = getattr(pltpu.get_tpu_info(), "vmem_capacity_bytes", None)
        if cap:
            return int(cap) * 3 // 4
    except Exception:
        pass
    return 48 * 1024 * 1024


def sparse_multilabel_categorical_crossentropy(
    y_pred, y_true, *, mask_zero=False, epsilon=1e-7,
    block_b=256, block_c=4096,
):
    """Pallas TPU forward pass. Returns f32 loss of shape y_pred.shape[:-1]."""
    *lead, C = y_pred.shape
    *lead_t, P = y_true.shape
    assert tuple(lead) == tuple(lead_t), "y_pred / y_true leading dims must match"

    B = 1
    for d in lead:
        B *= d
    yp = y_pred.reshape(B, C)                 # keep caller dtype (bf16 passthrough)
    yt = y_true.reshape(B, P).astype(jnp.int32)

    # Block sizes obeying the (8, 128) constraint with no wrapper-side padding:
    # second-minor must be a multiple of 8 (or the full dim), minor a multiple of
    # 128 (or the full dim). Ragged last blocks are handled in-kernel.
    if B < 8:
        bb = B
    else:
        bb = max(8, (min(block_b, B) // 8) * 8)
        if B >= 16:
            # guarantee >= 2 (balanced) row blocks so both v7x TensorCores get work;
            # on 1-TC chips this only adds a negligible number of grid steps.
            half = max(8, -(-((B + 1) // 2) // 8) * 8)     # ceil(B/2) rounded up to 8
            if half >= B:
                half = max(8, (B // 2) // 8 * 8)
            bb = min(bb, half)
    if C < 128:
        bc = C
    else:
        bc = max(128, (min(block_c, C) // 128) * 128)

    nb = pl.cdiv(B, bb)
    nc = pl.cdiv(C, bc)

    kernel = functools.partial(
        _smcc_kernel, mask_zero=mask_zero, epsilon=float(epsilon),
        num_classes=C, block_c=bc, num_pos=P)

    out = pl.pallas_call(
        kernel,
        out_shape=jax.ShapeDtypeStruct((B, 8), jnp.float32),
        grid_spec=pltpu.PrefetchScalarGridSpec(
            num_scalar_prefetch=0,
            grid=(nb, nc),                                 # C (reduction) axis last
            in_specs=[
                pl.BlockSpec((bb, bc), lambda i, j: (i, j)),   # y_pred tiles
                pl.BlockSpec((bb, P), lambda i, j: (i, 0)),    # y_true resident per row block
            ],
            out_specs=pl.BlockSpec((bb, 8), lambda i, j: (i, 0)),
            scratch_shapes=[
                pltpu.VMEM((bb, P), jnp.float32),   # accumulated gathered logits
                pltpu.VMEM((bb, 1), jnp.float32),   # running max for all_loss
                pltpu.VMEM((bb, 1), jnp.float32),   # running sum for all_loss
            ],
        ),
        compiler_params=pltpu.CompilerParams(
            dimension_semantics=("parallel", "arbitrary"),
            vmem_limit_bytes=_default_vmem_limit_bytes(),
        ),
    )(yp, yt)

    return out[:, 0].reshape(tuple(lead))


# ----------------------- pure-JAX reference (PyTorch semantics) -----------------
def _reference(y_pred, y_true, mask_zero=False, epsilon=1e-7):
    y_pred = y_pred.astype(jnp.float32)
    zeros = jnp.zeros_like(y_pred[..., :1])
    y_pred = jnp.concatenate([y_pred, zeros], axis=-1)
    if mask_zero:
        infs = zeros + jnp.inf
        y_pred = jnp.concatenate([infs, y_pred[..., 1:]], axis=-1)
    y_pos_2 = jnp.take_along_axis(y_pred, y_true, axis=-1)
    y_pos_1 = jnp.concatenate([y_pos_2, zeros], axis=-1)
    if mask_zero:
        y_pred = jnp.concatenate([-infs, y_pred[..., 1:]], axis=-1)
        y_pos_2 = jnp.take_along_axis(y_pred, y_true, axis=-1)
    pos_loss = jax.scipy.special.logsumexp(-y_pos_1, axis=-1)
    all_loss = jax.scipy.special.logsumexp(y_pred, axis=-1)
    aux_loss = jax.scipy.special.logsumexp(y_pos_2, axis=-1) - all_loss
    aux_loss = jnp.clip(1.0 - jnp.exp(aux_loss), epsilon, 1.0)
    neg_loss = all_loss + jnp.log(aux_loss)
    return pos_loss + neg_loss


if __name__ == "__main__":
    key = jax.random.PRNGKey(0)
    keys = jax.random.split(key, 4)

    def run_case(lead, C, P, mask_zero, k, dtype=jnp.float32, tol=1e-4, **kw):
        k1, k2 = jax.random.split(k)
        y_pred = (jax.random.normal(k1, (*lead, C), dtype=jnp.float32) * 2.0).astype(dtype)
        # indices in [1, C] (C addresses the appended zero column); the last slot
        # is 0, acting as padding when mask_zero=True.
        y_true = jax.random.randint(k2, (*lead, P), 1, C + 1)
        y_true = y_true.at[..., -1].set(0).astype(jnp.int32)

        out = sparse_multilabel_categorical_crossentropy(
            y_pred, y_true, mask_zero=mask_zero, **kw)
        out = jax.block_until_ready(out)
        ref = _reference(y_pred.astype(jnp.float32), y_true, mask_zero=mask_zero)
        assert out.shape == tuple(lead), (out.shape, lead)
        assert jnp.allclose(out, ref, atol=tol, rtol=tol), (lead, C, P, mask_zero, dtype)

    for mz in (False, True):
        # small C (< 128): single full-C tile, block_b == full B
        run_case((2, 2), 64, 4, mz, keys[0])
        # ragged B block (B=9, bb=8) + ragged C tile (C=200, bc=128)
        run_case((3, 3), 200, 5, mz, keys[1])
        # multi C-tile streaming (C=384, bc=128) + 2 row blocks (B=16, bb=8)
        run_case((2, 8), 384, 3, mz, keys[2], block_c=128)
        # bf16 passthrough (gather path runs in bf16; all LSE math stays f32)
        run_case((2, 8), 384, 3, mz, keys[3], dtype=jnp.bfloat16, tol=2e-3, block_c=128)

    print("KERNEL_OK")
</pallas_src>

<mosaic_0001>
module attributes {stable_mosaic.version = 11 : i64} {
  func.func @_smcc_kernel(%arg0: i32, %arg1: i32, %arg2: memref<4x64xf32, #tpu.memory_space<vmem>>, %arg3: memref<4x4xi32, #tpu.memory_space<vmem>>, %arg4: memref<4x8xf32, #tpu.memory_space<vmem>>, %arg5: memref<4x4xf32, #tpu.memory_space<vmem>>, %arg6: memref<4x1xf32, #tpu.memory_space<vmem>>, %arg7: memref<4x1xf32, #tpu.memory_space<vmem>>) attributes {dimension_semantics = [#tpu.dimension_semantics<parallel>, #tpu.dimension_semantics<arbitrary>], iteration_bounds = array<i64: 1, 1>, scalar_prefetch = 0 : i64, scratch_operands = 3 : i64, tpu.core_type = #tpu.core_type<tc>, window_params = [{transform_indices = @transform_0, window_bounds = array<i64: 4, 64>}, {transform_indices = @transform_1, window_bounds = array<i64: 4, 4>}, {transform_indices = @transform_2, window_bounds = array<i64: 4, 8>}]} {
    %c0_i32 = arith.constant 0 : i32
    %0 = arith.cmpi eq, %arg1, %c0_i32 : i32
    %1 = arith.extui %0 : i1 to i32
    %c0_i32_0 = arith.constant 0 : i32
    %2 = arith.cmpi ne, %1, %c0_i32_0 : i32
    scf.if %2 {
      %cst_27 = arith.constant 0.000000e+00 : f32
      %70 = vector.broadcast %cst_27 : f32 to vector<4x4xf32>
      %c0_28 = arith.constant 0 : index
      %c0_29 = arith.constant 0 : index
      %71 = vector.load %arg5[%c0_28, %c0_29] : memref<4x4xf32, #tpu.memory_space<vmem>>, vector<4x4xf32>
      tpu.vector_store %arg5[%c0_28, %c0_29], %70 {strides = array<i32>} : memref<4x4xf32, #tpu.memory_space<vmem>>, vector<4x4xf32>,
      %cst_30 = arith.constant 0.000000e+00 : f32
      %72 = vector.broadcast %cst_30 : f32 to vector<4x1xf32>
      %c0_31 = arith.constant 0 : index
      %c0_32 = arith.constant 0 : index
      %73 = vector.load %arg6[%c0_31, %c0_32] : memref<4x1xf32, #tpu.memory_space<vmem>>, vector<4x1xf32>
      tpu.vector_store %arg6[%c0_31, %c0_32], %72 {strides = array<i32>} : memref<4x1xf32, #tpu.memory_space<vmem>>, vector<4x1xf32>,
      %cst_33 = arith.constant 1.000000e+00 : f32
      %74 = vector.broadcast %cst_33 : f32 to vector<4x1xf32>
      %c0_34 = arith.constant 0 : index
      %c0_35 = arith.constant 0 : index
      %75 = vector.load %arg7[%c0_34, %c0_35] : memref<4x1xf32, #tpu.memory_space<vmem>>, vector<4x1xf32>
      tpu.vector_store %arg7[%c0_34, %c0_35], %74 {strides = array<i32>} : memref<4x1xf32, #tpu.memory_space<vmem>>, vector<4x1xf32>,
    } else {
    }
    %c0 = arith.constant 0 : index
    %c0_1 = arith.constant 0 : index
    %3 = vector.load %arg2[%c0, %c0_1] : memref<4x64xf32, #tpu.memory_space<vmem>>, vector<4x64xf32>
    %c0_2 = arith.constant 0 : index
    %c0_3 = arith.constant 0 : index
    %4 = vector.load %arg3[%c0_2, %c0_3] : memref<4x4xi32, #tpu.memory_space<vmem>>, vector<4x4xi32>
    %c64_i32 = arith.constant 64 : i32
    %5 = arith.muli %arg1, %c64_i32 : i32
    %6 = tpu.iota {dimensions = array<i32: 1>} : vector<4x64xi32>
    %cst = arith.constant dense<0xFF800000> : vector<4xf32>
    %7 = vector.multi_reduction <maximumf>, %3, %cst [1] : vector<4x64xf32> to vector<4xf32>
    %8 = vector.shape_cast %7 : vector<4xf32> to vector<4x1xf32>
    %c0_4 = arith.constant 0 : index
    %c0_5 = arith.constant 0 : index
    %9 = vector.load %arg6[%c0_4, %c0_5] : memref<4x1xf32, #tpu.memory_space<vmem>>, vector<4x1xf32>
    %10 = arith.maximumf %9, %8 : vector<4x1xf32>
    %c0_6 = arith.constant 0 : index
    %c0_7 = arith.constant 0 : index
    %11 = vector.load %arg7[%c0_6, %c0_7] : memref<4x1xf32, #tpu.memory_space<vmem>>, vector<4x1xf32>
    %12 = arith.subf %9, %10 : vector<4x1xf32>
    %13 = math.exp %12 : vector<4x1xf32>
    %14 = arith.mulf %11, %13 : vector<4x1xf32>
    %15 = vector.broadcast %10 : vector<4x1xf32> to vector<4x64xf32>
    %16 = arith.subf %3, %15 : vector<4x64xf32>
    %17 = math.exp %16 : vector<4x64xf32>
    %cst_8 = arith.constant dense<0.000000e+00> : vector<4xf32>
    %18 = vector.multi_reduction <add>, %17, %cst_8 [1] : vector<4x64xf32> to vector<4xf32>
    %19 = vector.shape_cast %18 : vector<4xf32> to vector<4x1xf32>
    %20 = arith.addf %14, %19 : vector<4x1xf32>
    %c0_9 = arith.constant 0 : index
    %c0_10 = arith.constant 0 : index
    %21 = vector.load %arg7[%c0_9, %c0_10] : memref<4x1xf32, #tpu.memory_space<vmem>>, vector<4x1xf32>
    tpu.vector_store %arg7[%c0_9, %c0_10], %20 {strides = array<i32>} : memref<4x1xf32, #tpu.memory_space<vmem>>, vector<4x1xf32>,
    %c0_11 = arith.constant 0 : index
    %c0_12 = arith.constant 0 : index
    %22 = vector.load %arg6[%c0_11, %c0_12] : memref<4x1xf32, #tpu.memory_space<vmem>>, vector<4x1xf32>
    tpu.vector_store %arg6[%c0_11, %c0_12], %10 {strides = array<i32>} : memref<4x1xf32, #tpu.memory_space<vmem>>, vector<4x1xf32>,
    %23 = vector.extract_strided_slice %4 {offsets = [0, 0], sizes = [4, 1], strides = [1, 1]} : vector<4x4xi32> to vector<4x1xi32>
    %24 = vector.broadcast %5 : i32 to vector<4x1xi32>
    %25 = arith.subi %23, %24 : vector<4x1xi32>
    %26 = vector.broadcast %25 : vector<4x1xi32> to vector<4x64xi32>
    %27 = arith.cmpi eq, %6, %26 : vector<4x64xi32>
    %c0_i32_13 = arith.constant 0 : i32
    %28 = arith.sitofp %c0_i32_13 : i32 to f32
    %29 = vector.broadcast %28 : f32 to vector<4x64xf32>
    %30 = arith.select %27, %3, %29 : vector<4x64xi1>, vector<4x64xf32>
    %cst_14 = arith.constant dense<0.000000e+00> : vector<4xf32>
    %31 = vector.multi_reduction <add>, %30, %cst_14 [1] : vector<4x64xf32> to vector<4xf32>
    %32 = vector.shape_cast %31 : vector<4xf32> to vector<4x1xf32>
    %33 = vector.extract_strided_slice %4 {offsets = [0, 1], sizes = [4, 1], strides = [1, 1]} : vector<4x4xi32> to vector<4x1xi32>
    %34 = vector.broadcast %5 : i32 to vector<4x1xi32>
    %35 = arith.subi %33, %34 : vector<4x1xi32>
    %36 = vector.broadcast %35 : vector<4x1xi32> to vector<4x64xi32>
    %37 = arith.cmpi eq, %6, %36 : vector<4x64xi32>
    %c0_i32_15 = arith.constant 0 : i32
    %38 = arith.sitofp %c0_i32_15 : i32 to f32
    %39 = vector.broadcast %38 : f32 to vector<4x64xf32>
    %40 = arith.select %37, %3, %39 : vector<4x64xi1>, vector<4x64xf32>
    %cst_16 = arith.constant dense<0.000000e+00> : vector<4xf32>
    %41 = vector.multi_reduction <add>, %40, %cst_16 [1] : vector<4x64xf32> to vector<4xf32>
    %42 = vector.shape_cast %41 : vector<4xf32> to vector<4x1xf32>
    %43 = vector.extract_strided_slice %4 {offsets = [0, 2], sizes = [4, 1], strides = [1, 1]} : vector<4x4xi32> to vector<4x1xi32>
    %44 = vector.broadcast %5 : i32 to vector<4x1xi32>
    %45 = arith.subi %43, %44 : vector<4x1xi32>
    %46 = vector.broadcast %45 : vector<4x1xi32> to vector<4x64xi32>
    %47 = arith.cmpi eq, %6, %46 : vector<4x64xi32>
    %c0_i32_17 = arith.constant 0 : i32
    %48 = arith.sitofp %c0_i32_17 : i32 to f32
    %49 = vector.broadcast %48 : f32 to vector<4x64xf32>
    %50 = arith.select %47, %3, %49 : vector<4x64xi1>, vector<4x64xf32>
    %cst_18 = arith.constant dense<0.000000e+00> : vector<4xf32>
    %51 = vector.multi_reduction <add>, %50, %cst_18 [1] : vector<4x64xf32> to vector<4xf32>
    %52 = vector.shape_cast %51 : vector<4xf32> to vector<4x1xf32>
    %53 = vector.extract_strided_slice %4 {offsets = [0, 3], sizes = [4, 1], strides = [1, 1]} : vector<4x4xi32> to vector<4x1xi32>
    %54 = vector.broadcast %5 : i32 to vector<4x1xi32>
    %55 = arith.subi %53, %54 : vector<4x1xi32>
    %56 = vector.broadcast %55 : vector<4x1xi32> to vector<4x64xi32>
    %57 = arith.cmpi eq, %6, %56 : vector<4x64xi32>
    %c0_i32_19 = arith.constant 0 : i32
    %58 = arith.sitofp %c0_i32_19 : i32 to f32
    %59 = vector.broadcast %58 : f32 to vector<4x64xf32>
    %60 = arith.select %57, %3, %59 : vector<4x64xi1>, vector<4x64xf32>
    %cst_20 = arith.constant dense<0.000000e+00> : vector<4xf32>
    %61 = vector.multi_reduction <add>, %60, %cst_20 [1] : vector<4x64xf32> to vector<4xf32>
    %62 = vector.shape_cast %61 : vector<4xf32> to vector<4x1xf32>
    %c0_21 = arith.constant 0 : index
    %c0_22 = arith.constant 0 : index
    %63 = vector.load %arg5[%c0_21, %c0_22] : memref<4x4xf32, #tpu.memory_space<vmem>>, vector<4x4xf32>
    %64 = tpu.concatenate %32, %42, %52, %62 in 1 : vector<4x1xf32>, vector<4x1xf32>, vector<4x1xf32>, vector<4x1xf32> -> vector<4x4xf32>
    %65 = arith.addf %63, %64 : vector<4x4xf32>
    %c0_23 = arith.constant 0 : index
    %c0_24 = arith.constant 0 : index
    %66 = vector.load %arg5[%c0_23, %c0_24] : memref<4x4xf32, #tpu.memory_space<vmem>>, vector<4x4xf32>
    tpu.vector_store %arg5[%c0_23, %c0_24], %65 {strides = array<i32>} : memref<4x4xf32, #tpu.memory_space<vmem>>, vector<4x4xf32>,
    %c0_i32_25 = arith.constant 0 : i32
    %67 = arith.cmpi eq, %arg1, %c0_i32_25 : i32
    %68 = arith.extui %67 : i1 to i32
    %c0_i32_26 = arith.constant 0 : i32
    %69 = arith.cmpi ne, %68, %c0_i32_26 : i32
    scf.if %69 {
      %c0_27 = arith.constant 0 : index
      %c0_28 = arith.constant 0 : index
      %70 = vector.load %arg6[%c0_27, %c0_28] : memref<4x1xf32, #tpu.memory_space<vmem>>, vector<4x1xf32>
      %c0_29 = arith.constant 0 : index
      %c0_30 = arith.constant 0 : index
      %71 = vector.load %arg7[%c0_29, %c0_30] : memref<4x1xf32, #tpu.memory_space<vmem>>, vector<4x1xf32>
      %72 = math.log %71 : vector<4x1xf32>
      %73 = arith.addf %70, %72 : vector<4x1xf32>
      %c0_31 = arith.constant 0 : index
      %c0_32 = arith.constant 0 : index
      %74 = vector.load %arg5[%c0_31, %c0_32] : memref<4x4xf32, #tpu.memory_space<vmem>>, vector<4x4xf32>
      %cst_33 = arith.constant 0.000000e+00 : f32
      %75 = vector.broadcast %cst_33 : f32 to vector<4x4xf32>
      %76 = arith.subf %75, %74 : vector<4x4xf32>
      %cst_34 = arith.constant dense<0xFF800000> : vector<4xf32>
      %77 = vector.multi_reduction <maximumf>, %76, %cst_34 [1] : vector<4x4xf32> to vector<4xf32>
      %78 = vector.shape_cast %77 : vector<4xf32> to vector<4x1xf32>
      %cst_35 = arith.constant 0.000000e+00 : f32
      %79 = vector.broadcast %cst_35 : f32 to vector<4x1xf32>
      %80 = arith.maximumf %78, %79 : vector<4x1xf32>
      %81 = vector.broadcast %80 : vector<4x1xf32> to vector<4x4xf32>
      %82 = arith.subf %76, %81 : vector<4x4xf32>
      %83 = math.exp %82 : vector<4x4xf32>
      %cst_36 = arith.constant dense<0.000000e+00> : vector<4xf32>
      %84 = vector.multi_reduction <add>, %83, %cst_36 [1] : vector<4x4xf32> to vector<4xf32>
      %85 = vector.shape_cast %84 : vector<4xf32> to vector<4x1xf32>
      %cst_37 = arith.constant 0.000000e+00 : f32
      %86 = vector.broadcast %cst_37 : f32 to vector<4x1xf32>
      %87 = arith.subf %86, %80 : vector<4x1xf32>
      %88 = math.exp %87 : vector<4x1xf32>
      %89 = arith.addf %85, %88 : vector<4x1xf32>
      %90 = math.log %89 : vector<4x1xf32>
      %91 = arith.addf %80, %90 : vector<4x1xf32>
      %cst_38 = arith.constant dense<0xFF800000> : vector<4xf32>
      %92 = vector.multi_reduction <maximumf>, %74, %cst_38 [1] : vector<4x4xf32> to vector<4xf32>
      %93 = vector.shape_cast %92 : vector<4xf32> to vector<4x1xf32>
      %94 = vector.broadcast %93 : vector<4x1xf32> to vector<4x4xf32>
      %95 = arith.subf %74, %94 : vector<4x4xf32>
      %96 = math.exp %95 : vector<4x4xf32>
      %cst_39 = arith.constant dense<0.000000e+00> : vector<4xf32>
      %97 = vector.multi_reduction <add>, %96, %cst_39 [1] : vector<4x4xf32> to vector<4xf32>
      %98 = vector.shape_cast %97 : vector<4xf32> to vector<4x1xf32>
      %99 = arith.subf %93, %73 : vector<4x1xf32>
      %100 = math.exp %99 : vector<4x1xf32>
      %101 = arith.mulf %98, %100 : vector<4x1xf32>
      %cst_40 = arith.constant 1.000000e+00 : f32
      %102 = vector.broadcast %cst_40 : f32 to vector<4x1xf32>
      %103 = arith.subf %102, %101 : vector<4x1xf32>
      %cst_41 = arith.constant 1.000000e-07 : f32
      %cst_42 = arith.constant 1.000000e+00 : f32
      %104 = vector.broadcast %cst_41 : f32 to vector<4x1xf32>
      %105 = arith.maximumf %104, %103 : vector<4x1xf32>
      %106 = vector.broadcast %cst_42 : f32 to vector<4x1xf32>
      %107 = arith.minimumf %106, %105 : vector<4x1xf32>
      %108 = math.log %107 : vector<4x1xf32>
      %109 = arith.addf %73, %108 : vector<4x1xf32>
      %110 = arith.addf %91, %109 : vector<4x1xf32>
      %111 = vector.shape_cast %110 : vector<4x1xf32> to vector<4x1xf32>
      %112 = vector.broadcast %111 : vector<4x1xf32> to vector<4x8xf32>
      %c0_43 = arith.constant 0 : index
      %c0_44 = arith.constant 0 : index
      %113 = vector.load %arg4[%c0_43, %c0_44] : memref<4x8xf32, #tpu.memory_space<vmem>>, vector<4x8xf32>
      tpu.vector_store %arg4[%c0_43, %c0_44], %112 {strides = array<i32>} : memref<4x8xf32, #tpu.memory_space<vmem>>, vector<4x8xf32>,
    } else {
    }
    return
  }
  func.func @transform_0(%arg0: i32, %arg1: i32) -> (i32, i32) {
    %c0_i32 = arith.constant 0 : i32
    return %arg0, %arg1 : i32, i32
  }
  func.func @transform_1(%arg0: i32, %arg1: i32) -> (i32, i32) {
    %c0_i32 = arith.constant 0 : i32
    %c0_i32_0 = arith.constant 0 : i32
    return %arg0, %c0_i32 : i32, i32
  }
  func.func @transform_2(%arg0: i32, %arg1: i32) -> (i32, i32) {
    %c0_i32 = arith.constant 0 : i32
    %c0_i32_0 = arith.constant 0 : i32
    return %arg0, %c0_i32 : i32, i32
  }
}

</mosaic_0001>

<llo_original>
// kernel: tpu_custom_call.1
$region0: #{tpu_custom_call.1}
  #allocation0 [shape = 'u32[]', space=smem, size = 0x4, offset = 0x4, fixed_abs, tag = 'smem constant byte address 0x4 - core index']
  #allocation1 [shape = 'u32[144,128]{1,0:T(1,128)}', space=vmem, size = 0x12000, scoped, tag = 'internal scratch']
  #allocation2 [shape = 'f32[4,4]{1,0:T(4,128)}', space=vmem, size = 0x800, scoped, tag = 'scratch operand']
  #allocation3 [shape = 'f32[4,1]{1,0:T(4,128)}', space=vmem, size = 0x800, scoped, tag = 'scratch operand']
  #allocation4 [shape = 'f32[4,1]{1,0:T(4,128)}', space=vmem, size = 0x800, scoped, tag = 'scratch operand']
  %s0 = inlined_call_operand.hbm [shape: f32[4,64], index: 0, kind: input, shape index: {}]
  %s1 = inlined_call_operand.hbm [shape: s32[4,4], index: 1, kind: input, shape index: {}]
  %s2 = inlined_call_operand.hbm [shape: f32[4,8], index: 2, kind: output, shape index: {}]
  %s3 = sld [smem:[#allocation0]]
  $region34: #{tpu_custom_call.1} parent=0
    _
  %s5 = ssub.s32 1, %s3
  %s6 = scalar_select 0, %s5, %s3
  $region1: #{tpu_custom_call.1} parent=0
    #allocation5 [shape = 'u8[2048]{0}', space=vmem, size = 0x800, scoped, tag = 'input window, operand 0, single buffered']
    #allocation6 [shape = 's32[1]{0}', space=sflag, size = 0x4, scoped, tag = 'scoped memory for tpu_custom_call.1']
    #allocation7 [shape = 's32[1]{0}', space=sflag, size = 0x4, scoped, tag = 'scoped memory for tpu_custom_call.1']
    #allocation8 [shape = 'u8[2048]{0}', space=vmem, size = 0x800, scoped, tag = 'input window, operand 1, single buffered']
    #allocation9 [shape = 's32[1]{0}', space=sflag, size = 0x4, scoped, tag = 'scoped memory for tpu_custom_call.1']
    #allocation10 [shape = 'u8[2048]{0}', space=vmem, size = 0x800, scoped, tag = 'output window, operand 0, single buffered']
    %7 = vsyncpa [#allocation6], 0
    %8 = vsyncpa [#allocation9], 0
    %9 = vsyncpa [#allocation7], 0
    // Predicated region
    $region2: #{tpu_custom_call.1} parent=1 // pred_check
      _
    $region3: #{tpu_custom_call.1} parent=1 // pred_check_branch
      %11 = sbr.rel (0) target = $region5
    $region4: #{tpu_custom_call.1} parent=1 // pred_region
      %s13 = ssub.s32 64, 64
      %14 = vsyncadd [#allocation6], %s13
      %s16 = sshll.u32 [#allocation5], 4
      %s17 = int_to_ptr.vmem [resolvable:$true] %s16
      %19 = dma.hbm_to_vmem [thread:$0]  %s0, 64, %s17, [#allocation6]
    $region5: #{tpu_custom_call.1} parent=1 // pred_fallthru
      _
    // Predicated region
    $region6: #{tpu_custom_call.1} parent=1 // pred_check
      _
    $region7: #{tpu_custom_call.1} parent=1 // pred_check_branch
      %21 = sbr.rel (0) target = $region9
    $region8: #{tpu_custom_call.1} parent=1 // pred_region
      %s23 = ssub.s32 64, 64
      %24 = vsyncadd [#allocation9], %s23
      %s26 = sshll.u32 [#allocation8], 4
      %s27 = int_to_ptr.vmem [resolvable:$true] %s26
      %29 = dma.hbm_to_vmem [thread:$0]  %s1, 64, %s27, [#allocation9]
    $region9: #{tpu_custom_call.1} parent=1 // pred_fallthru
      _
    // Predicated region
    $region10: #{tpu_custom_call.1} parent=1 // pred_check
      _
    $region11: #{tpu_custom_call.1} parent=1 // pred_check_branch
      %31 = sbr.rel (0) target = $region13
    $region12: #{tpu_custom_call.1} parent=1 // pred_region
      %32 = dma.done [#allocation6], 64
    $region13: #{tpu_custom_call.1} parent=1 // pred_fallthru
      _
    // Predicated region
    $region14: #{tpu_custom_call.1} parent=1 // pred_check
      _
    $region15: #{tpu_custom_call.1} parent=1 // pred_check_branch
      %34 = sbr.rel (0) target = $region17
    $region16: #{tpu_custom_call.1} parent=1 // pred_region
      %35 = dma.done [#allocation9], 64
    $region17: #{tpu_custom_call.1} parent=1 // pred_fallthru
      _
    %p36 = scmp.eq.s32.totalorder 0, 0
    // Predicated region
    $region18: #{tpu_custom_call.1} parent=1 // pred_check
      %p37 = pneg %p36
    $region19: #{tpu_custom_call.1} parent=1 // pred_check_branch
      %39 = sbr.rel (%p37) target = $region21
    $region20: #{tpu_custom_call.1} parent=1 // pred_region
      %vm40 = vcmask 27648
      %41 = vst.msk [vmem:[#allocation2] sm:$0xf] %vm40, 0.0
      %vm42 = vcmask 3072
      %43 = vst.msk [vmem:[#allocation3] sm:$0xf] %vm42, 0.0
      %44 = vst.msk [vmem:[#allocation4] sm:$0xf] %vm42, 1.0
    $region21: #{tpu_custom_call.1} parent=1 // pred_fallthru
      _
    %v45 = vld [vmem:[#allocation5] sm:$0xf]
    %v46 = vld [vmem:[#allocation8] sm:$0xf]
    %s47 = smul.u32 0, 64
    %v48 = vlaneseq
    %v49 = vand.u32 %v48, 127
    %vm50 = vcmask 519168
    %v51 = vsel %vm50, %v45, -inf
    %52 = vmax.xlane.f32.xlu0 %v51
    %v53 = vpop.xlane.xlu0 %52
    %v54 = vld [vmem:[#allocation3] sm:$0xf]
    %v55 = vmax.f32 %v54, %v53
    %v56 = vld [vmem:[#allocation4] sm:$0xf]
    %v57 = vsub.f32 %v54, %v55
    %v58 = vmul.f32 %v57, 1.442695
    %v59 = vpow.pop %v58
    %v60 = vmul.f32 %v56, %v59
    %62 = vset.pattern.permute.xlu0 0
    %63 = vperm.xlu0 %62, %v55
    %v64 = vpop.permute.xlu0 %63
    %v66 = vsub.f32 %v45, %v64
    %v67 = vmul.f32 %v66, 1.442695
    %v68 = vpow.pop %v67
    %v69 = vsel %vm50, %v68, 0.0
    %70 = vadd.xlane.f32.xlu0 %v69
    %v71 = vpop.xlane.xlu0 %70
    %v72 = vadd.f32 %v60, %v71
    %vm73 = vcmask 3072
    %74 = vst.msk [vmem:[#allocation4] sm:$0xf] %vm73, %v72
    %75 = vst.msk [vmem:[#allocation3] sm:$0xf] %vm73, %v55
    %v76 = vstv %s47
    %v77 = vsub.s32 %v46, %v76
    %78 = vset.pattern.permute.xlu0 0
    %79 = vperm.xlu0 %78, %v77
    %v80 = vpop.permute.xlu0 %79
    %vm81 = vcmp.eq.s32.totalorder %v49, %v80
    %v82 = vsel %vm81, %v45, 0.0
    %v83 = vsel %vm50, %v82, 0.0
    %84 = vadd.xlane.f32.xlu0 %v83
    %v85 = vpop.xlane.xlu0 %84
    %86 = vset.pattern.permute.xlu0 1
    %87 = vperm.xlu0 %86, %v77
    %v88 = vpop.permute.xlu0 %87
    %vm89 = vcmp.eq.s32.totalorder %v49, %v88
    %v90 = vsel %vm89, %v45, 0.0
    %v91 = vsel %vm50, %v90, 0.0
    %92 = vadd.xlane.f32.xlu0 %v91
    %v93 = vpop.xlane.xlu0 %92
    %94 = vset.pattern.permute.xlu0 2
    %95 = vperm.xlu0 %94, %v77
    %v96 = vpop.permute.xlu0 %95
    %vm97 = vcmp.eq.s32.totalorder %v49, %v96
    %v98 = vsel %vm97, %v45, 0.0
    %v99 = vsel %vm50, %v98, 0.0
    %100 = vadd.xlane.f32.xlu0 %v99
    %v101 = vpop.xlane.xlu0 %100
    %102 = vset.pattern.permute.xlu0 3
    %103 = vperm.xlu0 %102, %v77
    %v104 = vpop.permute.xlu0 %103
    %vm105 = vcmp.eq.s32.totalorder %v49, %v104
    %v106 = vsel %vm105, %v45, 0.0
    %v107 = vsel %vm50, %v106, 0.0
    %108 = vadd.xlane.f32.xlu0 %v107
    %v109 = vpop.xlane.xlu0 %108
    %v110 = vld [vmem:[#allocation2] sm:$0xf]
    %vm111 = vcmask 7168
    %v112 = vsel %vm111, %v85, %v93
    %vm113 = vcmask 15360
    %v114 = vsel %vm113, %v112, %v101
    %vm115 = vcmask 23552
    %v116 = vsel %vm115, %v114, %v109
    %v117 = vadd.f32 %v110, %v116
    %vm118 = vcmask 27648
    %119 = vst.msk [vmem:[#allocation2] sm:$0xf] %vm118, %v117
    // Predicated region
    $region22: #{tpu_custom_call.1} parent=1 // pred_check
      %p120 = pneg %p36
    $region23: #{tpu_custom_call.1} parent=1 // pred_check_branch
      %122 = sbr.rel (%p120) target = $region25
    $region24: #{tpu_custom_call.1} parent=1 // pred_region
      %v123 = vld [vmem:[#allocation3] sm:$0xf]
      %v124 = vld [vmem:[#allocation4] sm:$0xf]
      %v125 = vlog2.pop %v124
      %v126 = vmul.f32 %v125, 0.6931472
      %v127 = vadd.f32 %v123, %v126
      %v128 = vld [vmem:[#allocation2] sm:$0xf]
      %v129 = vsub.f32 0.0, %v128
      %v130 = vsel %vm118, %v129, -inf
      %131 = vmax.xlane.f32.xlu0 %v130
      %v132 = vpop.xlane.xlu0 %131
      %v133 = vmax.f32 %v132, 0.0
      %v134 = vsub.f32 %v129, %v133
      %v135 = vmul.f32 %v134, 1.442695
      %v136 = vpow.pop %v135
      %v137 = vsel %vm118, %v136, 0.0
      %138 = vadd.xlane.f32.xlu0 %v137
      %v139 = vpop.xlane.xlu0 %138
      %v140 = vsub.f32 0.0, %v133
      %v141 = vmul.f32 %v140, 1.442695
      %v142 = vpow.pop %v141
      %v143 = vadd.f32 %v139, %v142
      %v144 = vlog2.pop %v143
      %v145 = vmul.f32 %v144, 0.6931472
      %v146 = vadd.f32 %v133, %v145
      %v147 = vsel %vm118, %v128, -inf
      %148 = vmax.xlane.f32.xlu0 %v147
      %v149 = vpop.xlane.xlu0 %148
      %v150 = vsub.f32 %v128, %v149
      %v151 = vmul.f32 %v150, 1.442695
      %v152 = vpow.pop %v151
      %v153 = vsel %vm118, %v152, 0.0
      %154 = vadd.xlane.f32.xlu0 %v153
      %v155 = vpop.xlane.xlu0 %154
      %v156 = vsub.f32 %v149, %v127
      %v157 = vmul.f32 %v156, 1.442695
      %v158 = vpow.pop %v157
      %v159 = vmul.f32 %v155, %v158
      %v160 = vsub.f32 1.0, %v159
      %v161 = vmax.f32 %v160, 1e-07
      %v162 = vmin.f32 %v161, 1.0
      %v163 = vlog2.pop %v162
      %v164 = vmul.f32 %v163, 0.6931472
      %v165 = vadd.f32 %v127, %v164
      %v166 = vadd.f32 %v146, %v165
      %168 = vset.pattern.permute.xlu0 0
      %169 = vperm.xlu0 %168, %v166
      %v170 = vpop.permute.xlu0 %169
      %vm172 = vcmask 60416
      %173 = vst.msk [vmem:[#allocation10] sm:$0xf] %vm172, %v170
    $region25: #{tpu_custom_call.1} parent=1 // pred_fallthru
      _
    // Predicated region
    $region26: #{tpu_custom_call.1} parent=1 // pred_check
      _
    $region27: #{tpu_custom_call.1} parent=1 // pred_check_branch
      %175 = sbr.rel (0) target = $region29
    $region28: #{tpu_custom_call.1} parent=1 // pred_region
      %s177 = ssub.s32 64, 64
      %178 = vsyncadd [#allocation7], %s177
      %s180 = sshll.u32 [#allocation10], 4
      %s181 = int_to_ptr.vmem [resolvable:$true] %s180
      %183 = dma.vmem_to_hbm [thread:$0]  %s181, 64, %s2, [#allocation7]
    $region29: #{tpu_custom_call.1} parent=1 // pred_fallthru
      _
    // Predicated region
    $region30: #{tpu_custom_call.1} parent=1 // pred_check
      _
    $region31: #{tpu_custom_call.1} parent=1 // pred_check_branch
      %185 = sbr.rel (0) target = $region33
    $region32: #{tpu_custom_call.1} parent=1 // pred_region
      %186 = dma.done [#allocation7], 64
    $region33: #{tpu_custom_call.1} parent=1 // pred_fallthru
      _
    %187 = vsyncpa [#allocation6], 1
    %188 = vsyncpa [#allocation9], 1
    %189 = vsyncpa [#allocation7], 1

</llo_original>
